<compile_context>
chip_gen: v5e
topology: v5e:2x2
jax: 0.10.0
libtpu: 0.0.40
codegen_flags: <defaults>
</compile_context>

<pallas_src>
import functools

import jax
import jax.numpy as jnp
from jax.experimental import pallas as pl
from jax.experimental.pallas import tpu as pltpu


_VMEM_BUDGET = 32 * 1024 * 1024   # target working-set (safe inside v7x's 64 MiB/TC)
_VMEM_LIMIT = 48 * 1024 * 1024    # scoped-VMEM limit handed to Mosaic
_DEFAULT_MAX_K = 2048             # switch to K-tiling above this many input channels


def _round_up(v, m):
    return ((v + m - 1) // m) * m


# --------------------------------------------------------------------------
# Kernels
# --------------------------------------------------------------------------
def _fused_linear_kernel(x_ref, w_ref, b_ref, out_ref):
    """out = x @ W_fused + b_fused  (single MXU matmul, f32 accumulate)."""
    acc = jnp.dot(x_ref[...], w_ref[...], preferred_element_type=jnp.float32)
    out_ref[...] = (acc + b_ref[...].astype(jnp.float32)).astype(out_ref.dtype)


def _fused_linear_kernel_ktiled(x_ref, w_ref, b_ref, out_ref, acc_ref):
    """K-tiled variant: accumulate partial matmuls over the channel axis."""
    k = pl.program_id(1)

    @pl.when(k == 0)
    def _init():
        acc_ref[...] = jnp.zeros_like(acc_ref)

    acc_ref[...] += jnp.dot(x_ref[...], w_ref[...],
                            preferred_element_type=jnp.float32)

    @pl.when(k == pl.num_programs(1) - 1)
    def _finalize():
        out_ref[...] = (acc_ref[...] + b_ref[...].astype(jnp.float32)
                        ).astype(out_ref.dtype)


# --------------------------------------------------------------------------
# Parameter fusion (run ONCE at setup time, not per forward call)
# --------------------------------------------------------------------------
def fuse_params(w_mu, b_mu, w_lv, b_lv, dtype=None):
    """Fuse the two linear layers into one lane-padded weight/bias pair.

    Weights are [in_channels, out_features] (i.e. torch linear.weight.T),
    biases [out_features] or [1, out_features].  Returns (w_fused [C, O_pad],
    b_fused [1, O_pad]) with O_pad = round_up(2*out_features, 128).  Pass
    dtype=jnp.bfloat16 for the bf16-MXU path (accuracy tradeoff).
    """
    if b_mu.ndim == 1:
        b_mu = b_mu[None, :]
    if b_lv.ndim == 1:
        b_lv = b_lv[None, :]
    w = jnp.concatenate([w_mu, w_lv], axis=1)        # [C, 2*O]
    b = jnp.concatenate([b_mu, b_lv], axis=1)        # [1, 2*O]
    o2 = w.shape[1]
    o_pad = _round_up(o2, 128)                       # lane-dense output stores
    if o_pad != o2:
        w = jnp.pad(w, ((0, 0), (0, o_pad - o2)))
        b = jnp.pad(b, ((0, 0), (0, o_pad - o2)))
    if dtype is not None:
        w = w.astype(dtype)
        b = b.astype(dtype)
    return w, b


# --------------------------------------------------------------------------
# Tile selection helpers (pure Python / trace-time)
# --------------------------------------------------------------------------
def _pick_k_tile(C, k_tile):
    """Return TK (TK == C means no K-tiling)."""
    if k_tile is not None:
        if k_tile >= C:
            return C
        if (C % k_tile != 0) or (k_tile % 128 != 0):
            raise ValueError("k_tile must be a multiple of 128 that divides C")
        return k_tile
    if C <= _DEFAULT_MAX_K or C % 128 != 0:
        return C
    # largest multiple of 128 that divides C and is <= _DEFAULT_MAX_K
    best = 128
    for t in range(128, _DEFAULT_MAX_K + 1, 128):
        if C % t == 0:
            best = t
    return best


def _pick_row_tile(N, TK, O_pad, in_itemsize, out_itemsize, max_tile_rows,
                   sub, k_tiled):
    # >=2 row tiles (when N allows) so ("parallel",) sharding can use both
    # v7x TensorCores; harmless single-TC behavior on v5e/v6e.
    min_tiles = 2 if N >= 2 * sub else 1
    n_tiles = max(pl.cdiv(N, max_tile_rows), min_tiles)
    tn = _round_up(pl.cdiv(N, n_tiles), sub)

    # Resident fused W + b (assume double-buffered; pl.Buffered(1) on the
    # constant-index W/b specs would halve this — left as a follow-up sweep).
    w_resident = 2 * TK * O_pad * in_itemsize + 2 * O_pad * in_itemsize

    def vmem_usage(t):
        u = 2 * t * TK * in_itemsize         # x double buffer
        u += 2 * t * O_pad * out_itemsize    # out double buffer
        u += w_resident
        if k_tiled:
            u += t * O_pad * 4               # f32 accumulator scratch
        return u

    while tn > sub and vmem_usage(tn) > _VMEM_BUDGET:
        tn = _round_up(tn // 2, sub)

    if tn >= N:     # single block covers all rows -> exact full-dim size
        tn = N
    return tn


# --------------------------------------------------------------------------
# Forward
# --------------------------------------------------------------------------
@functools.partial(jax.jit,
                   static_argnames=("out_features", "max_tile_rows", "k_tile"))
def regressor_head(x, w_fused, b_fused, out_features, *,
                   max_tile_rows=1024, k_tile=None):
    """Pallas RegressorHead forward.

    x:        [N, C]
    w_fused:  [C, O_pad]   (from fuse_params)
    b_fused:  [1, O_pad]
    out_features: num_classes * 4
    Returns dict {'mu': [N, out_features], 'logvar': [N, out_features]}.
    """
    N, C = x.shape
    C_w, O_pad = w_fused.shape
    assert C_w == C, "w_fused channel dim mismatch"
    assert O_pad % 128 == 0, "w_fused must be lane-padded (use fuse_params)"
    O = out_features
    assert 2 * O <= O_pad

    in_itemsize = x.dtype.itemsize
    out_itemsize = in_itemsize                     # output keeps x.dtype
    sub = {4: 8, 2: 16, 1: 32}.get(in_itemsize, 8)  # dtype-aware sublane packing

    TK = _pick_k_tile(C, k_tile)
    k_tiled = TK != C
    TN = _pick_row_tile(N, TK, O_pad, in_itemsize, out_itemsize,
                        max_tile_rows, sub, k_tiled)
    n_rows = pl.cdiv(N, TN)                        # ragged last tile: masked writes

    cost = pl.CostEstimate(
        flops=2 * N * C * O_pad,
        transcendentals=0,
        bytes_accessed=(N * C * in_itemsize
                        + C * O_pad * in_itemsize
                        + O_pad * in_itemsize
                        + N * O_pad * out_itemsize),
    )

    if not k_tiled:
        kernel = _fused_linear_kernel
        grid = (n_rows,)
        in_specs = [
            pl.BlockSpec((TN, C), lambda i: (i, 0)),       # x: streamed row tiles
            pl.BlockSpec((C, O_pad), lambda i: (0, 0)),    # fused W: resident
            pl.BlockSpec((1, O_pad), lambda i: (0, 0)),    # fused b: resident
        ]
        out_spec = pl.BlockSpec((TN, O_pad), lambda i: (i, 0))
        scratch = []
        dims = ("parallel",)
    else:
        kernel = _fused_linear_kernel_ktiled
        grid = (n_rows, C // TK)
        in_specs = [
            pl.BlockSpec((TN, TK), lambda i, k: (i, k)),
            pl.BlockSpec((TK, O_pad), lambda i, k: (k, 0)),
            pl.BlockSpec((1, O_pad), lambda i, k: (0, 0)),
        ]
        out_spec = pl.BlockSpec((TN, O_pad), lambda i, k: (i, 0))
        scratch = [pltpu.VMEM((TN, O_pad), jnp.float32)]
        dims = ("parallel", "arbitrary")

    out = pl.pallas_call(
        kernel,
        out_shape=jax.ShapeDtypeStruct((N, O_pad), x.dtype),
        grid_spec=pltpu.PrefetchScalarGridSpec(
            num_scalar_prefetch=0,
            grid=grid,
            in_specs=in_specs,
            out_specs=out_spec,
            scratch_shapes=scratch,
        ),
        compiler_params=pltpu.CompilerParams(
            dimension_semantics=dims,
            vmem_limit_bytes=_VMEM_LIMIT,
        ),
        cost_estimate=cost,
    )(x, w_fused, b_fused)

    # Split fused output into mu / logvar (column padding stripped; rows exact).
    return {"mu": out[:, :O], "logvar": out[:, O:2 * O]}


# --------------------------------------------------------------------------
# Helpers / demo
# --------------------------------------------------------------------------
def init_params(key, in_channels, num_classes, dtype=jnp.float32):
    """Deterministic init mimicking nn.Linear default (uniform +-1/sqrt(fan_in))."""
    out_features = num_classes * 4
    k1, k2, k3, k4 = jax.random.split(key, 4)
    bound = 1.0 / (in_channels ** 0.5)
    w_mu = jax.random.uniform(k1, (in_channels, out_features), dtype,
                              minval=-bound, maxval=bound)
    b_mu = jax.random.uniform(k2, (1, out_features), dtype,
                              minval=-bound, maxval=bound)
    w_lv = jax.random.uniform(k3, (in_channels, out_features), dtype,
                              minval=-bound, maxval=bound)
    b_lv = jax.random.uniform(k4, (1, out_features), dtype,
                              minval=-bound, maxval=bound)
    return w_mu, b_mu, w_lv, b_lv


def _reference(x, w_mu, b_mu, w_lv, b_lv):
    hi = jax.lax.Precision.HIGHEST
    return (jnp.dot(x, w_mu, precision=hi) + b_mu,
            jnp.dot(x, w_lv, precision=hi) + b_lv)


if __name__ == "__main__":
    key = jax.random.PRNGKey(0)
    k_x1, k_p1, k_x2, k_p2 = jax.random.split(key, 4)

    num_classes = 2                      # -> out_features = 8
    O = num_classes * 4

    # --- case 1: small ragged batch, full-C (single matmul) path -----------
    batch1, channels1 = 10, 32
    x1 = jax.random.normal(k_x1, (batch1, channels1), jnp.float32)
    w_mu1, b_mu1, w_lv1, b_lv1 = init_params(k_p1, channels1, num_classes)
    wf1, bf1 = fuse_params(w_mu1, b_mu1, w_lv1, b_lv1)   # hoisted fusion (once)
    out1 = regressor_head(x1, wf1, bf1, out_features=O)
    jax.block_until_ready(out1)
    mu_ref1, lv_ref1 = _reference(x1, w_mu1, b_mu1, w_lv1, b_lv1)
    assert out1["mu"].shape == mu_ref1.shape
    assert out1["logvar"].shape == lv_ref1.shape
    assert jnp.allclose(out1["mu"], mu_ref1, atol=1e-2, rtol=1e-2)
    assert jnp.allclose(out1["logvar"], lv_ref1, atol=1e-2, rtol=1e-2)

    # --- case 2: force the K-tiled accumulator path (C=256, TK=128) --------
    batch2, channels2 = 24, 256
    x2 = jax.random.normal(k_x2, (batch2, channels2), jnp.float32)
    w_mu2, b_mu2, w_lv2, b_lv2 = init_params(k_p2, channels2, num_classes)
    wf2, bf2 = fuse_params(w_mu2, b_mu2, w_lv2, b_lv2)
    out2 = regressor_head(x2, wf2, bf2, out_features=O, k_tile=128)
    jax.block_until_ready(out2)
    mu_ref2, lv_ref2 = _reference(x2, w_mu2, b_mu2, w_lv2, b_lv2)
    assert jnp.allclose(out2["mu"], mu_ref2, atol=1e-2, rtol=1e-2)
    assert jnp.allclose(out2["logvar"], lv_ref2, atol=1e-2, rtol=1e-2)

    print("KERNEL_OK")
</pallas_src>

<mosaic_0001>
module attributes {stable_mosaic.version = 11 : i64} {
  func.func @_fused_linear_kernel(%arg0: i32, %arg1: memref<10x32xf32, #tpu.memory_space<vmem>>, %arg2: memref<32x128xf32, #tpu.memory_space<vmem>>, %arg3: memref<1x128xf32, #tpu.memory_space<vmem>>, %arg4: memref<10x128xf32, #tpu.memory_space<vmem>>) attributes {dimension_semantics = [#tpu.dimension_semantics<parallel>], iteration_bounds = array<i64: 1>, scalar_prefetch = 0 : i64, scratch_operands = 0 : i64, tpu.core_type = #tpu.core_type<tc>, window_params = [{transform_indices = @transform_0, window_bounds = array<i64: 10, 32>}, {pipeline_mode = #tpu.pipeline_mode<synchronous>, transform_indices = @transform_1, window_bounds = array<i64: 32, 128>}, {pipeline_mode = #tpu.pipeline_mode<synchronous>, transform_indices = @transform_2, window_bounds = array<i64: 1, 128>}, {transform_indices = @transform_3, window_bounds = array<i64: 10, 128>}]} {
    %c0 = arith.constant 0 : index
    %c0_0 = arith.constant 0 : index
    %0 = vector.load %arg1[%c0, %c0_0] : memref<10x32xf32, #tpu.memory_space<vmem>>, vector<10x32xf32>
    %c0_1 = arith.constant 0 : index
    %c0_2 = arith.constant 0 : index
    %1 = vector.load %arg2[%c0_1, %c0_2] : memref<32x128xf32, #tpu.memory_space<vmem>>, vector<32x128xf32>
    %cst = arith.constant dense<0.000000e+00> : vector<10x128xf32>
    %2 = tpu.matmul %0, %1, %cst {dimension_numbers = #tpu.dot_dimension_numbers<[1], [0], [0], [1], [0, 0, 1, 1], [], []>} : vector<10x32xf32>, vector<32x128xf32>, vector<10x128xf32> -> vector<10x128xf32>
    %c0_3 = arith.constant 0 : index
    %c0_4 = arith.constant 0 : index
    %3 = vector.load %arg3[%c0_3, %c0_4] : memref<1x128xf32, #tpu.memory_space<vmem>>, vector<1x128xf32>
    %4 = vector.broadcast %3 : vector<1x128xf32> to vector<10x128xf32>
    %5 = arith.addf %2, %4 : vector<10x128xf32>
    %c0_5 = arith.constant 0 : index
    %c0_6 = arith.constant 0 : index
    %6 = vector.load %arg4[%c0_5, %c0_6] : memref<10x128xf32, #tpu.memory_space<vmem>>, vector<10x128xf32>
    tpu.vector_store %arg4[%c0_5, %c0_6], %5 {strides = array<i32>} : memref<10x128xf32, #tpu.memory_space<vmem>>, vector<10x128xf32>,
    return
  }
  func.func @transform_0(%arg0: i32) -> (i32, i32) {
    %c0_i32 = arith.constant 0 : i32
    %c0_i32_0 = arith.constant 0 : i32
    return %arg0, %c0_i32 : i32, i32
  }
  func.func @transform_1(%arg0: i32) -> (i32, i32) {
    %c0_i32 = arith.constant 0 : i32
    %c0_i32_0 = arith.constant 0 : i32
    %c0_i32_1 = arith.constant 0 : i32
    return %c0_i32, %c0_i32_0 : i32, i32
  }
  func.func @transform_2(%arg0: i32) -> (i32, i32) {
    %c0_i32 = arith.constant 0 : i32
    %c0_i32_0 = arith.constant 0 : i32
    %c0_i32_1 = arith.constant 0 : i32
    return %c0_i32, %c0_i32_0 : i32, i32
  }
  func.func @transform_3(%arg0: i32) -> (i32, i32) {
    %c0_i32 = arith.constant 0 : i32
    %c0_i32_0 = arith.constant 0 : i32
    return %arg0, %c0_i32 : i32, i32
  }
}

</mosaic_0001>

<llo_original>
// kernel: regressor_head.1
$region0: #{regressor_head.1}
  #allocation0 [shape = 'u32[]', space=smem, size = 0x4, offset = 0x4, fixed_abs, tag = 'smem constant byte address 0x4 - core index']
  #allocation1 [shape = 'u32[72,128]{1,0:T(1,128)}', space=vmem, size = 0x9000, scoped, tag = 'internal scratch']
  %s0 = inlined_call_operand.hbm [shape: f32[10,32], index: 0, kind: input, shape index: {}]
  %s1 = inlined_call_operand.hbm [shape: f32[32,128], index: 1, kind: input, shape index: {}]
  %s2 = inlined_call_operand.vmem [shape: f32[1,128], index: 2, kind: input, shape index: {}]
  %s3 = inlined_call_operand.vmem [shape: f32[10,128], index: 3, kind: output, shape index: {}]
  %s4 = sld [smem:[#allocation0]]
  $region30: #{regressor_head.1} parent=0
    _
  %s6 = ssub.s32 1, %s4
  %s7 = scalar_select 0, %s6, %s4
  $region1: #{regressor_head.1} parent=0
    #allocation2 [shape = 'u8[8192]{0}', space=vmem, size = 0x2000, scoped, tag = 'input window, operand 0, single buffered']
    #allocation3 [shape = 's32[1]{0}', space=sflag, size = 0x4, scoped, tag = 'scoped memory for regressor_head.1']
    #allocation4 [shape = 'u8[16384]{0}', space=vmem, size = 0x4000, scoped, tag = 'input window, operand 1, single buffered']
    #allocation5 [shape = 's32[1]{0}', space=sflag, size = 0x4, scoped, tag = 'scoped memory for regressor_head.1']
    %8 = vsyncpa [#allocation3], 0
    %9 = vsyncpa [#allocation5], 0
    // Predicated region
    $region2: #{regressor_head.1} parent=1 // pred_check
      _
    $region3: #{regressor_head.1} parent=1 // pred_check_branch
      %11 = sbr.rel (0) target = $region5
    $region4: #{regressor_head.1} parent=1 // pred_region
      %13 = vsyncadd [#allocation3], 0
      %s14 = sshll.u32 %s0, 4
      %s15 = int_to_ptr.hbm [resolvable:$true] %s14
      %s16 = sshll.u32 [#allocation2], 4
      %s17 = int_to_ptr.vmem [resolvable:$true] %s16
      %22 = dma.hbm_to_vmem [thread:$0]  %s15, 256, %s17, [#allocation3], 128, 128, 8
    $region5: #{regressor_head.1} parent=1 // pred_fallthru
      _
    // Predicated region
    $region6: #{regressor_head.1} parent=1 // pred_check
      _
    $region7: #{regressor_head.1} parent=1 // pred_check_branch
      %24 = sbr.rel (0) target = $region9
    $region8: #{regressor_head.1} parent=1 // pred_region
      %26 = vsyncadd [#allocation5], 0
      %s27 = sshll.u32 %s1, 4
      %s28 = int_to_ptr.hbm [resolvable:$true] %s27
      %s29 = sshll.u32 [#allocation4], 4
      %s30 = int_to_ptr.vmem [resolvable:$true] %s29
      %35 = dma.hbm_to_vmem [thread:$0]  %s28, 512, %s30, [#allocation5], 128, 128, 8
    $region9: #{regressor_head.1} parent=1 // pred_fallthru
      _
    // Predicated region
    $region10: #{regressor_head.1} parent=1 // pred_check
      _
    $region11: #{regressor_head.1} parent=1 // pred_check_branch
      %37 = sbr.rel (0) target = $region13
    $region12: #{regressor_head.1} parent=1 // pred_region
      _
    $region13: #{regressor_head.1} parent=1 // pred_fallthru
      _
    // Predicated region
    $region14: #{regressor_head.1} parent=1 // pred_check
      _
    $region15: #{regressor_head.1} parent=1 // pred_check_branch
      %39 = sbr.rel (0) target = $region17
    $region16: #{regressor_head.1} parent=1 // pred_region
      %41 = dma.done [#allocation3], 256
    $region17: #{regressor_head.1} parent=1 // pred_fallthru
      _
    // Predicated region
    $region18: #{regressor_head.1} parent=1 // pred_check
      _
    $region19: #{regressor_head.1} parent=1 // pred_check_branch
      %43 = sbr.rel (0) target = $region21
    $region20: #{regressor_head.1} parent=1 // pred_region
      %45 = dma.done [#allocation5], 512
    $region21: #{regressor_head.1} parent=1 // pred_fallthru
      _
    %v46 = vld [vmem:[#allocation2] sm:$0xff]
    %v47 = vld [vmem:[#allocation2 + $0x8] sm:$0x3]
    %v48 = vld [vmem:[#allocation4] sm:$0xff]
    %v49 = vld [vmem:[#allocation4 + $0x8] sm:$0xff]
    %v50 = vld [vmem:[#allocation4 + $0x10] sm:$0xff]
    %v51 = vld [vmem:[#allocation4 + $0x18] sm:$0xff]
    %v52 = vld [vmem:[%s2] sm:$0x1]
    %v54 = vperm.slane %v52, 0
    %vm56 = vcmask 261120
    %v58 = vsel %vm56, %v46, 0
    %v61 = vsel %vm56, %v47, 0
    %63 = vmatpush.msra.mxu0 0.0
    %64 = vmatpush.msra.mxu0 0.0
    %65 = vmatpush.msra.mxu0 0.0
    %66 = vmatpush.msra.mxu0 0.0
    %67 = vmatpush.msra.mxu0 0.0
    %68 = vmatpush.msra.mxu0 0.0
    %69 = vmatpush.msra.mxu0 0.0
    %70 = vmatpush.msra.mxu0 0.0
    %71 = vmatpush.msra.mxu0 0.0
    %72 = vmatpush.msra.mxu0 0.0
    %73 = vmatpush.msra.mxu0 0.0
    %74 = vmatpush.msra.mxu0 0.0
    %75 = vmatpush.msra.mxu0 %v51
    %76 = vmatpush.msra.mxu0 %v50
    %77 = vmatpush.msra.mxu0 %v49
    %78 = vmatpush.msra.mxu0 %v48
    %79 = vmatmul.f32.gmra.mxu0 %v58
    %v80 = vpop.f32.mrf.mxu0
    %v81 = vadd.f32 %v54, %v80
    %82 = vmatmul.f32.gmra.mxu0 %v61
    %v83 = vpop.f32.mrf.mxu0
    %v84 = vadd.f32 %v54, %v83
    %85 = vdwg.mxu0
    %86 = vst [vmem:[%s3] sm:$0xff] %v81
    %87 = vst [vmem:[%s3 + $0x8] sm:$0x3] %v84
    // Predicated region
    $region22: #{regressor_head.1} parent=1 // pred_check
      _
    $region23: #{regressor_head.1} parent=1 // pred_check_branch
      %89 = sbr.rel (0) target = $region25
    $region24: #{regressor_head.1} parent=1 // pred_region
      _
    $region25: #{regressor_head.1} parent=1 // pred_fallthru
      _
    // Predicated region
    $region26: #{regressor_head.1} parent=1 // pred_check
      _
    $region27: #{regressor_head.1} parent=1 // pred_check_branch
      %91 = sbr.rel (0) target = $region29
    $region28: #{regressor_head.1} parent=1 // pred_region
      _
    $region29: #{regressor_head.1} parent=1 // pred_fallthru
      _
    %92 = vsyncpa [#allocation3], 1
    %93 = vsyncpa [#allocation5], 1

</llo_original>
